<compile_context>
chip_gen: v5e
topology: v5e:2x2
jax: 0.10.0
libtpu: 0.0.40
codegen_flags: <defaults>
</compile_context>

<pallas_src>
import jax
import jax.numpy as jnp
from jax.experimental import pallas as pl
from jax.experimental.pallas import tpu as pltpu


def _round_up(x, m):
    return ((x + m - 1) // m) * m


# ----------------------------------------------------------------------------
# Pallas kernel: fused MLP  (Linear -> ReLU)* -> Linear -> Sigmoid
# Transposed layout: rows (N) on the lane axis, features on sublanes.
# ----------------------------------------------------------------------------
def _mlp_sigmoid_kernel(x_ref, *refs):
    """x_ref: [in_dim, tm].  refs = (w0, b0, w1, b1, ..., out_ref).

    wi is [out_i, in_i] (PyTorch Linear layout), bi is [out_i, 1].
    Computes h <- relu(w @ h + b) per hidden layer, sigmoid after the last.
    out_ref: [out_dim, tm]  (lane-dense stores, tm multiple of 128).
    """
    out_ref = refs[-1]
    wb = refs[:-1]
    n_layers = len(wb) // 2

    h = x_ref[...].astype(jnp.float32)
    for i in range(n_layers):
        w = wb[2 * i][...].astype(jnp.float32)        # [out_i, in_i]
        b = wb[2 * i + 1][...].astype(jnp.float32)    # [out_i, 1] -> bcast lanes
        h = jnp.dot(w, h, preferred_element_type=jnp.float32) + b
        if i < n_layers - 1:
            h = jnp.maximum(h, 0.0)                   # ReLU (VPU)
    out_ref[...] = jax.nn.sigmoid(h).astype(out_ref.dtype)   # Sigmoid (EUP)


def _mlp_sigmoid_pallas(x2d, weights, biases, out_dim, *, tm=2048):
    """x2d: [N, in_dim] -> [N, out_dim] = sigmoid(MLP(x2d))."""
    n, in_dim = x2d.shape
    # Rows live on the lane axis -> tile must be a multiple of 128; clamp so
    # tiny problems don't allocate a needlessly large tile (and so realistic
    # N still yields >=2 grid steps for the two v7x TensorCores).
    tm = max(128, min(tm, _round_up(n, 128)))

    # Single layout pass: [N, in_dim] -> [in_dim, N] so N sits on lanes.
    x_t = x2d.T

    in_specs = [pl.BlockSpec((in_dim, tm), lambda i: (0, i))]
    args = [x_t]
    for w, b in zip(weights, biases):
        in_specs.append(pl.BlockSpec(w.shape, lambda i: (0, 0)))   # weight resident
        in_specs.append(pl.BlockSpec(b.shape, lambda i: (0, 0)))
        args.append(w)
        args.append(b)

    out_t = pl.pallas_call(
        _mlp_sigmoid_kernel,
        out_shape=jax.ShapeDtypeStruct((out_dim, n), jnp.float32),
        grid=(pl.cdiv(n, tm),),                       # partial last block OK
        in_specs=in_specs,
        out_specs=pl.BlockSpec((out_dim, tm), lambda i: (0, i)),
        compiler_params=pltpu.CompilerParams(dimension_semantics=("parallel",)),
    )(*args)
    return out_t.T                                    # [N, out_dim]


# ----------------------------------------------------------------------------
# Glue: expand_input (pure JAX reshuffle, no compute)
# ----------------------------------------------------------------------------
def expand_input(states, m):
    """states: [batch, length, n_agents, state_dim] ->
       [batch, length, n_agents, ..., n_agents, m*state_dim]  (m copies)."""
    if m == 0:
        return None
    if m == 1:
        return states                                 # identity: skip concat copy
    # TODO(synk): for member>=2, fuse this broadcast/concat into the kernel via
    # index_map / scalar prefetch to avoid the A^(m-1)x HBM blow-up.
    b, l, n_agents, d = states.shape
    full_shape = (b, l) + (n_agents,) * m + (d,)
    parts = []
    for i in range(m):
        view_shape = (b, l) + tuple(n_agents if j == i else 1 for j in range(m)) + (d,)
        parts.append(jnp.broadcast_to(states.reshape(view_shape), full_shape))
    return jnp.concatenate(parts, axis=-1)


# ----------------------------------------------------------------------------
# Module equivalents
# ----------------------------------------------------------------------------
class PredicateNNPallas:
    """PyTorch PredicateNN: Sequential(Linear/ReLU ... Linear) then Sigmoid,
    applied over the last dim.  Weights kept in PyTorch [out, in] layout."""

    def __init__(self, in_dim, h_dims=None, out_dim=1, key=None):
        self.in_dim = in_dim
        self.h_dims = list(h_dims) if h_dims is not None else []
        self.out_dim = out_dim
        if key is None:
            key = jax.random.PRNGKey(0)
        dims = [in_dim] + self.h_dims + [out_dim]
        self.weights, self.biases = [], []
        for fan_in, fan_out in zip(dims[:-1], dims[1:]):
            key, kw, kb = jax.random.split(key, 3)
            bound = 1.0 / (fan_in ** 0.5)
            w = jax.random.uniform(kw, (fan_out, fan_in), jnp.float32, -bound, bound)
            b = jax.random.uniform(kb, (fan_out, 1), jnp.float32, -bound, bound)
            self.weights.append(w)
            self.biases.append(b)

    def __call__(self, states):
        lead = states.shape[:-1]
        x2d = states.reshape((-1, states.shape[-1]))
        out = _mlp_sigmoid_pallas(x2d, self.weights, self.biases, self.out_dim)
        return out.reshape(lead + (self.out_dim,))

    # pure-JAX reference for validation
    def reference(self, states):
        h = states.astype(jnp.float32)
        n = len(self.weights)
        for i, (w, b) in enumerate(zip(self.weights, self.biases)):
            h = h @ w.T + b[:, 0]
            if i < n - 1:
                h = jnp.maximum(h, 0.0)
        return jax.nn.sigmoid(h)


class N_aryPrimitivesNNPallas:
    def __init__(self, member, in_dim, h_dims, out_dim, key=None):
        self.member = member
        self.in_dim = in_dim
        self.h_dims = h_dims
        self.out_dim = out_dim
        if in_dim == 0:
            self.out_dim = 0
            self.predicates = lambda x: None
        else:
            self.predicates = PredicateNNPallas(in_dim, h_dims, out_dim, key=key)

    def __call__(self, states, beta=0):
        return self.predicates(expand_input(states, self.member))


class NullaryPrimitivesNNPallas(N_aryPrimitivesNNPallas):
    """member=0, in_dim=0  =>  forward(states) returns None (exact PyTorch semantics)."""

    def __init__(self, state_dim=0, h_dims=None, out_dim=10, key=None):
        super().__init__(0, 0, h_dims, out_dim, key=key)

    def __call__(self, states, beta=0):
        return self.predicates(states)


# ----------------------------------------------------------------------------
if __name__ == "__main__":
    key = jax.random.PRNGKey(0)
    k_states, k_params = jax.random.split(key)

    batch, length, n_agents, state_dim = 2, 8, 4, 6
    h_dims, out_dim = [32], 10
    states = jax.random.normal(k_states, (batch, length, n_agents, state_dim),
                               dtype=jnp.float32)

    # 1) NullaryPrimitivesNN: exact semantics — forward returns None (no compute).
    nullary = NullaryPrimitivesNNPallas(state_dim=0, h_dims=h_dims, out_dim=out_dim)
    assert nullary(states) is None
    assert nullary.out_dim == 0

    # 2) Exercise the Pallas hot path (PredicateNN MLP+sigmoid) via the unary
    #    (member=1) configuration of the same class hierarchy.
    unary = N_aryPrimitivesNNPallas(member=1, in_dim=state_dim, h_dims=h_dims,
                                    out_dim=out_dim, key=k_params)
    out = unary(states)
    out = jax.block_until_ready(out)
    assert out.shape == (batch, length, n_agents, out_dim), out.shape

    ref = unary.predicates.reference(expand_input(states, 1))
    err = float(jnp.max(jnp.abs(out - ref)))
    assert err < 1e-5, f"max abs err {err}"

    print("KERNEL_OK")
</pallas_src>

<mosaic_0001>
module attributes {stable_mosaic.version = 11 : i64} {
  func.func @_mlp_sigmoid_kernel(%arg0: i32, %arg1: memref<6x128xf32, #tpu.memory_space<vmem>>, %arg2: memref<32x6xf32, #tpu.memory_space<vmem>>, %arg3: memref<32x1xf32, #tpu.memory_space<vmem>>, %arg4: memref<10x32xf32, #tpu.memory_space<vmem>>, %arg5: memref<10x1xf32, #tpu.memory_space<vmem>>, %arg6: memref<10x128xf32, #tpu.memory_space<vmem>>) attributes {dimension_semantics = [#tpu.dimension_semantics<parallel>], iteration_bounds = array<i64: 1>, scalar_prefetch = 0 : i64, scratch_operands = 0 : i64, tpu.core_type = #tpu.core_type<tc>, window_params = [{transform_indices = @transform_0, window_bounds = array<i64: 6, 128>}, {pipeline_mode = #tpu.pipeline_mode<synchronous>, transform_indices = @transform_1, window_bounds = array<i64: 32, 6>}, {pipeline_mode = #tpu.pipeline_mode<synchronous>, transform_indices = @transform_2, window_bounds = array<i64: 32, 1>}, {pipeline_mode = #tpu.pipeline_mode<synchronous>, transform_indices = @transform_3, window_bounds = array<i64: 10, 32>}, {pipeline_mode = #tpu.pipeline_mode<synchronous>, transform_indices = @transform_4, window_bounds = array<i64: 10, 1>}, {transform_indices = @transform_5, window_bounds = array<i64: 10, 128>}]} {
    %c0 = arith.constant 0 : index
    %c0_0 = arith.constant 0 : index
    %0 = vector.load %arg1[%c0, %c0_0] : memref<6x128xf32, #tpu.memory_space<vmem>>, vector<6x128xf32>
    %c0_1 = arith.constant 0 : index
    %c0_2 = arith.constant 0 : index
    %1 = vector.load %arg2[%c0_1, %c0_2] : memref<32x6xf32, #tpu.memory_space<vmem>>, vector<32x6xf32>
    %c0_3 = arith.constant 0 : index
    %c0_4 = arith.constant 0 : index
    %2 = vector.load %arg3[%c0_3, %c0_4] : memref<32x1xf32, #tpu.memory_space<vmem>>, vector<32x1xf32>
    %cst = arith.constant dense<0.000000e+00> : vector<32x128xf32>
    %3 = tpu.matmul %1, %0, %cst {dimension_numbers = #tpu.dot_dimension_numbers<[1], [0], [0], [1], [0, 0, 1, 1], [], []>} : vector<32x6xf32>, vector<6x128xf32>, vector<32x128xf32> -> vector<32x128xf32>
    %4 = vector.broadcast %2 : vector<32x1xf32> to vector<32x128xf32>
    %5 = arith.addf %3, %4 : vector<32x128xf32>
    %cst_5 = arith.constant 0.000000e+00 : f32
    %6 = vector.broadcast %cst_5 : f32 to vector<32x128xf32>
    %7 = arith.maximumf %5, %6 : vector<32x128xf32>
    %c0_6 = arith.constant 0 : index
    %c0_7 = arith.constant 0 : index
    %8 = vector.load %arg4[%c0_6, %c0_7] : memref<10x32xf32, #tpu.memory_space<vmem>>, vector<10x32xf32>
    %c0_8 = arith.constant 0 : index
    %c0_9 = arith.constant 0 : index
    %9 = vector.load %arg5[%c0_8, %c0_9] : memref<10x1xf32, #tpu.memory_space<vmem>>, vector<10x1xf32>
    %cst_10 = arith.constant dense<0.000000e+00> : vector<10x128xf32>
    %10 = tpu.matmul %8, %7, %cst_10 {dimension_numbers = #tpu.dot_dimension_numbers<[1], [0], [0], [1], [0, 0, 1, 1], [], []>} : vector<10x32xf32>, vector<32x128xf32>, vector<10x128xf32> -> vector<10x128xf32>
    %11 = vector.broadcast %9 : vector<10x1xf32> to vector<10x128xf32>
    %12 = arith.addf %10, %11 : vector<10x128xf32>
    %13 = arith.negf %12 : vector<10x128xf32>
    %14 = math.exp %13 : vector<10x128xf32>
    %cst_11 = arith.constant 1.000000e+00 : f32
    %15 = vector.broadcast %cst_11 : f32 to vector<10x128xf32>
    %16 = arith.addf %15, %14 : vector<10x128xf32>
    %17 = arith.divf %15, %16 : vector<10x128xf32>
    %c0_12 = arith.constant 0 : index
    %c0_13 = arith.constant 0 : index
    %18 = vector.load %arg6[%c0_12, %c0_13] : memref<10x128xf32, #tpu.memory_space<vmem>>, vector<10x128xf32>
    tpu.vector_store %arg6[%c0_12, %c0_13], %17 {strides = array<i32>} : memref<10x128xf32, #tpu.memory_space<vmem>>, vector<10x128xf32>,
    return
  }
  func.func @transform_0(%arg0: i32) -> (i32, i32) {
    %c0_i32 = arith.constant 0 : i32
    %c0_i32_0 = arith.constant 0 : i32
    return %c0_i32, %arg0 : i32, i32
  }
  func.func @transform_1(%arg0: i32) -> (i32, i32) {
    %c0_i32 = arith.constant 0 : i32
    %c0_i32_0 = arith.constant 0 : i32
    %c0_i32_1 = arith.constant 0 : i32
    return %c0_i32, %c0_i32_0 : i32, i32
  }
  func.func @transform_2(%arg0: i32) -> (i32, i32) {
    %c0_i32 = arith.constant 0 : i32
    %c0_i32_0 = arith.constant 0 : i32
    %c0_i32_1 = arith.constant 0 : i32
    return %c0_i32, %c0_i32_0 : i32, i32
  }
  func.func @transform_3(%arg0: i32) -> (i32, i32) {
    %c0_i32 = arith.constant 0 : i32
    %c0_i32_0 = arith.constant 0 : i32
    %c0_i32_1 = arith.constant 0 : i32
    return %c0_i32, %c0_i32_0 : i32, i32
  }
  func.func @transform_4(%arg0: i32) -> (i32, i32) {
    %c0_i32 = arith.constant 0 : i32
    %c0_i32_0 = arith.constant 0 : i32
    %c0_i32_1 = arith.constant 0 : i32
    return %c0_i32, %c0_i32_0 : i32, i32
  }
  func.func @transform_5(%arg0: i32) -> (i32, i32) {
    %c0_i32 = arith.constant 0 : i32
    %c0_i32_0 = arith.constant 0 : i32
    return %c0_i32, %arg0 : i32, i32
  }
}

</mosaic_0001>

<llo_original>
// kernel: tpu_custom_call.1
$region0: #{tpu_custom_call.1}
  #allocation0 [shape = 'u32[]', space=smem, size = 0x4, offset = 0x4, fixed_abs, tag = 'smem constant byte address 0x4 - core index']
  #allocation1 [shape = 'u32[72,128]{1,0:T(1,128)}', space=vmem, size = 0x9000, scoped, tag = 'internal scratch']
  %s0 = inlined_call_operand.vmem [shape: f32[6,64], index: 0, kind: input, shape index: {}]
  %s1 = inlined_call_operand.vmem [shape: f32[32,6], index: 1, kind: input, shape index: {}]
  %s2 = inlined_call_operand.vmem [shape: f32[32,1], index: 2, kind: input, shape index: {}]
  %s3 = inlined_call_operand.vmem [shape: f32[10,32], index: 3, kind: input, shape index: {}]
  %s4 = inlined_call_operand.vmem [shape: f32[10,1], index: 4, kind: input, shape index: {}]
  %s5 = inlined_call_operand.hbm [shape: f32[10,64], index: 5, kind: output, shape index: {}]
  %s6 = sld [smem:[#allocation0]]
  $region30: #{tpu_custom_call.1} parent=0
    _
  %s8 = ssub.s32 1, %s6
  %s9 = scalar_select 0, %s8, %s6
  $region1: #{tpu_custom_call.1} parent=0
    #allocation2 [shape = 'u8[8192]{0}', space=vmem, size = 0x2000, scoped, tag = 'output window, operand 0, single buffered']
    #allocation3 [shape = 's32[1]{0}', space=sflag, size = 0x4, scoped, tag = 'scoped memory for tpu_custom_call.1']
    %10 = vsyncpa [#allocation3], 0
    // Predicated region
    $region2: #{tpu_custom_call.1} parent=1 // pred_check
      _
    $region3: #{tpu_custom_call.1} parent=1 // pred_check_branch
      %12 = sbr.rel (0) target = $region5
    $region4: #{tpu_custom_call.1} parent=1 // pred_region
      _
    $region5: #{tpu_custom_call.1} parent=1 // pred_fallthru
      _
    // Predicated region
    $region6: #{tpu_custom_call.1} parent=1 // pred_check
      _
    $region7: #{tpu_custom_call.1} parent=1 // pred_check_branch
      %14 = sbr.rel (0) target = $region9
    $region8: #{tpu_custom_call.1} parent=1 // pred_region
      _
    $region9: #{tpu_custom_call.1} parent=1 // pred_fallthru
      _
    // Predicated region
    $region10: #{tpu_custom_call.1} parent=1 // pred_check
      _
    $region11: #{tpu_custom_call.1} parent=1 // pred_check_branch
      %16 = sbr.rel (0) target = $region13
    $region12: #{tpu_custom_call.1} parent=1 // pred_region
      _
    $region13: #{tpu_custom_call.1} parent=1 // pred_fallthru
      _
    // Predicated region
    $region14: #{tpu_custom_call.1} parent=1 // pred_check
      _
    $region15: #{tpu_custom_call.1} parent=1 // pred_check_branch
      %18 = sbr.rel (0) target = $region17
    $region16: #{tpu_custom_call.1} parent=1 // pred_region
      _
    $region17: #{tpu_custom_call.1} parent=1 // pred_fallthru
      _
    // Predicated region
    $region18: #{tpu_custom_call.1} parent=1 // pred_check
      _
    $region19: #{tpu_custom_call.1} parent=1 // pred_check_branch
      %20 = sbr.rel (0) target = $region21
    $region20: #{tpu_custom_call.1} parent=1 // pred_region
      _
    $region21: #{tpu_custom_call.1} parent=1 // pred_fallthru
      _
    %v21 = vld [vmem:[%s0] sm:$0x3f]
    %v22 = vld [vmem:[%s1] sm:$0xff]
    %v23 = vld [vmem:[%s1 + $0x8] sm:$0xff]
    %v24 = vld [vmem:[%s1 + $0x10] sm:$0xff]
    %v25 = vld [vmem:[%s1 + $0x18] sm:$0xff]
    %v26 = vld [vmem:[%s2] sm:$0xff]
    %v27 = vld [vmem:[%s2 + $0x8] sm:$0xff]
    %v28 = vld [vmem:[%s2 + $0x10] sm:$0xff]
    %v29 = vld [vmem:[%s2 + $0x18] sm:$0xff]
    %31 = vset.pattern.permute.xlu0 0
    %32 = vperm.xlu0 %31, %v26
    %v33 = vpop.permute.xlu0 %32
    %36 = vset.pattern.permute.xlu0 0
    %37 = vperm.xlu0 %36, %v27
    %v38 = vpop.permute.xlu0 %37
    %41 = vset.pattern.permute.xlu0 0
    %42 = vperm.xlu0 %41, %v28
    %v43 = vpop.permute.xlu0 %42
    %46 = vset.pattern.permute.xlu0 0
    %47 = vperm.xlu0 %46, %v29
    %v48 = vpop.permute.xlu0 %47
    %vm50 = vcmask 48128
    %v52 = vsel %vm50, %v22, 0
    %v55 = vsel %vm50, %v23, 0
    %v58 = vsel %vm50, %v24, 0
    %v61 = vsel %vm50, %v25, 0
    %vm63 = vcmask 1045504
    %v65 = vsel %vm63, %v21, 0
    %67 = vmatpush.msra.mxu0 0.0
    %68 = vmatpush.msra.mxu0 0.0
    %69 = vmatpush.msra.mxu0 0.0
    %70 = vmatpush.msra.mxu0 0.0
    %71 = vmatpush.msra.mxu0 0.0
    %72 = vmatpush.msra.mxu0 0.0
    %73 = vmatpush.msra.mxu0 0.0
    %74 = vmatpush.msra.mxu0 0.0
    %75 = vmatpush.msra.mxu0 0.0
    %76 = vmatpush.msra.mxu0 0.0
    %77 = vmatpush.msra.mxu0 0.0
    %78 = vmatpush.msra.mxu0 0.0
    %79 = vmatpush.msra.mxu0 0.0
    %80 = vmatpush.msra.mxu0 0.0
    %81 = vmatpush.msra.mxu0 0.0
    %82 = vmatpush.msra.mxu0 %v65
    %83 = vmatmul.f32.gmra.mxu0 %v52
    %v84 = vpop.f32.mrf.mxu0
    %v85 = vadd.f32 %v33, %v84
    %86 = vmatmul.f32.gmra.mxu0 %v55
    %v87 = vpop.f32.mrf.mxu0
    %v88 = vadd.f32 %v38, %v87
    %89 = vmatmul.f32.gmra.mxu0 %v58
    %v90 = vpop.f32.mrf.mxu0
    %v91 = vadd.f32 %v43, %v90
    %92 = vmatmul.f32.gmra.mxu0 %v61
    %v93 = vpop.f32.mrf.mxu0
    %v94 = vadd.f32 %v48, %v93
    %95 = vdwg.mxu0
    %v96 = vmax.f32 %v85, 0.0
    %v97 = vmax.f32 %v88, 0.0
    %v98 = vmax.f32 %v91, 0.0
    %v99 = vmax.f32 %v94, 0.0
    %v100 = vld [vmem:[%s3] sm:$0xff]
    %v101 = vld [vmem:[%s3 + $0x8] sm:$0x3]
    %v102 = vld [vmem:[%s4] sm:$0xff]
    %v103 = vld [vmem:[%s4 + $0x8] sm:$0x3]
    %105 = vset.pattern.permute.xlu0 0
    %106 = vperm.xlu0 %105, %v102
    %v107 = vpop.permute.xlu0 %106
    %110 = vset.pattern.permute.xlu0 0
    %111 = vperm.xlu0 %110, %v103
    %v112 = vpop.permute.xlu0 %111
    %vm114 = vcmask 261120
    %v116 = vsel %vm114, %v100, 0
    %v119 = vsel %vm114, %v101, 0
    %121 = vmatpush.msra.mxu0 0.0
    %122 = vmatpush.msra.mxu0 0.0
    %123 = vmatpush.msra.mxu0 0.0
    %124 = vmatpush.msra.mxu0 0.0
    %125 = vmatpush.msra.mxu0 0.0
    %126 = vmatpush.msra.mxu0 0.0
    %127 = vmatpush.msra.mxu0 0.0
    %128 = vmatpush.msra.mxu0 0.0
    %129 = vmatpush.msra.mxu0 0.0
    %130 = vmatpush.msra.mxu0 0.0
    %131 = vmatpush.msra.mxu0 0.0
    %132 = vmatpush.msra.mxu0 0.0
    %133 = vmatpush.msra.mxu0 %v99
    %134 = vmatpush.msra.mxu0 %v98
    %135 = vmatpush.msra.mxu0 %v97
    %136 = vmatpush.msra.mxu0 %v96
    %137 = vmatmul.f32.gmra.mxu0 %v116
    %v138 = vpop.f32.mrf.mxu0
    %v139 = vadd.f32 %v107, %v138
    %140 = vmatmul.f32.gmra.mxu0 %v119
    %v141 = vpop.f32.mrf.mxu0
    %v142 = vadd.f32 %v112, %v141
    %143 = vdwg.mxu0
    %v144 = vxor.u32 %v139, 2147483648
    %v145 = vxor.u32 %v142, 2147483648
    %v146 = vmul.f32 %v144, 1.442695
    %v147 = vpow.pop %v146
    %v148 = vmul.f32 %v145, 1.442695
    %v149 = vpow.pop %v148
    %v150 = vadd.f32 %v147, 1.0
    %v151 = vadd.f32 %v149, 1.0
    %v152 = vrcp.pop %v150
    %v153 = vmul.f32 %v150, %v152
    %v154 = vsub.f32 1.0, %v153
    %v155 = vmul.f32 %v152, %v154
    %v156 = vadd.f32 %v152, %v155
    %vm157 = vweird.f32 %v150
    %vm158 = vweird.f32 %v152
    %vm159 = vmor %vm157, %vm158
    %v160 = vsel %vm159, %v152, %v156
    %v161 = vand.u32 2147483647, %v150
    %vm162 = vcmp.eq.f32.partialorder %v161, 8.507059e+37
    %v163 = vand.u32 %v150, 2147483648
    %v164 = vor.u32 1.1754944e-38, %v163
    %v165 = vsel %vm162, %v164, %v160
    %v166 = vmul.f32 1.0, %v165
    %v167 = vrcp.pop %v151
    %v168 = vmul.f32 %v151, %v167
    %v169 = vsub.f32 1.0, %v168
    %v170 = vmul.f32 %v167, %v169
    %v171 = vadd.f32 %v167, %v170
    %vm172 = vweird.f32 %v151
    %vm173 = vweird.f32 %v167
    %vm174 = vmor %vm172, %vm173
    %v175 = vsel %vm174, %v167, %v171
    %v176 = vand.u32 2147483647, %v151
    %vm177 = vcmp.eq.f32.partialorder %v176, 8.507059e+37
    %v178 = vand.u32 %v151, 2147483648
    %v179 = vor.u32 1.1754944e-38, %v178
    %v180 = vsel %vm177, %v179, %v175
    %v181 = vmul.f32 1.0, %v180
    %182 = vst [vmem:[#allocation2] sm:$0xff] %v166
    %183 = vst [vmem:[#allocation2 + $0x8] sm:$0x3] %v181
    // Predicated region
    $region22: #{tpu_custom_call.1} parent=1 // pred_check
      _
    $region23: #{tpu_custom_call.1} parent=1 // pred_check_branch
      %185 = sbr.rel (0) target = $region25
    $region24: #{tpu_custom_call.1} parent=1 // pred_region
      %187 = vsyncadd [#allocation3], 0
      %s188 = sshll.u32 [#allocation2], 4
      %s189 = int_to_ptr.vmem [resolvable:$true] %s188
      %s190 = sshll.u32 %s5, 4
      %s191 = int_to_ptr.hbm [resolvable:$true] %s190
      %196 = dma.vmem_to_hbm [thread:$0]  %s189, 256, %s191, [#allocation3], 128, 128, 8
    $region25: #{tpu_custom_call.1} parent=1 // pred_fallthru
      _
    // Predicated region
    $region26: #{tpu_custom_call.1} parent=1 // pred_check
      _
    $region27: #{tpu_custom_call.1} parent=1 // pred_check_branch
      %198 = sbr.rel (0) target = $region29
    $region28: #{tpu_custom_call.1} parent=1 // pred_region
      %200 = dma.done [#allocation3], 256
    $region29: #{tpu_custom_call.1} parent=1 // pred_fallthru
      _
    %201 = vsyncpa [#allocation3], 1

</llo_original>
